<compile_context>
chip_gen: v7x
topology: tpu7x:2x2x1
jax: 0.10.0
libtpu: 0.0.40
codegen_flags: <defaults>
</compile_context>

<pallas_src>
import jax
import jax.numpy as jnp
from jax import lax
from jax.experimental import pallas as pl
from jax.experimental.pallas import tpu as pltpu

NUM_TASKS = 4
PHI = 1.0
EPS = 1e-8

# Synthetic task dimensionalities (DIMENSIONS / EMOTIONS / CULTURE_EMOTIONS
# are project constants not provided with the module).
# TODO(synk): replace with the real DIMENSIONS/EMOTIONS/CULTURE_EMOTIONS sizes.
NUM_CLASSES = 8    # voc_type classes
DIM_LOW     = 2    # DIMENSIONS (e.g. arousal / valence)
DIM_HIGH    = 10   # EMOTIONS
DIM_CULTURE = 12   # CULTURE_EMOTIONS
D_TOTAL     = DIM_LOW + DIM_HIGH + DIM_CULTURE   # 24


# ------------------------------ Fused kernel ------------------------------- #

def _fused_kernel(labels_ref, logits_ref, p_ref, t_ref, unw_ref, rc_ref, out_ref):
    # ---- task 0: mean cross-entropy (labels via iota-compare, no one-hot,
    #      no logp materialization) ----
    x = logits_ref[...].astype(jnp.float32)                       # (N, C)
    n, c = x.shape
    m = jnp.max(x, axis=-1, keepdims=True)                        # (N, 1)
    lse = m + jnp.log(jnp.sum(jnp.exp(x - m), axis=-1, keepdims=True))
    cls_ids = lax.broadcasted_iota(jnp.int32, (n, c), 1)          # (N, C)
    sel = cls_ids == labels_ref[...]                              # (N, C) bool
    picked = jnp.sum(jnp.where(sel, x, 0.0), axis=-1, keepdims=True)  # (N, 1)
    ce = jnp.sum(lse - picked) * (1.0 / n)

    # ---- CCC over the single concatenated (N, 24) slab; all stats are
    #      (1, 24) lane tiles ----
    p = p_ref[...].astype(jnp.float32)                            # (N, 24)
    t = t_ref[...].astype(jnp.float32)
    mp = jnp.mean(p, axis=0, keepdims=True)                       # (1, 24)
    mt = jnp.mean(t, axis=0, keepdims=True)
    dp = p - mp
    dt = t - mt
    vp = jnp.mean(dp * dp, axis=0, keepdims=True)                 # (1, 24)
    vt = jnp.mean(dt * dt, axis=0, keepdims=True)
    cov = jnp.mean(dp * dt, axis=0, keepdims=True)
    ccc = (2.0 * cov) / (vp + vt + (mp - mt) ** 2 + EPS)          # (1, 24)

    # per-task means from masked sums over the single (1, 24) ccc row
    col = lax.broadcasted_iota(jnp.int32, (1, D_TOTAL), 1)
    low_mask = col < DIM_LOW
    high_mask = (col >= DIM_LOW) & (col < DIM_LOW + DIM_HIGH)
    cul_mask = col >= DIM_LOW + DIM_HIGH
    loss_low = 1.0 - jnp.sum(jnp.where(low_mask, ccc, 0.0)) * (1.0 / DIM_LOW)
    loss_high = 1.0 - jnp.sum(jnp.where(high_mask, ccc, 0.0)) * (1.0 / DIM_HIGH)
    loss_cul = 1.0 - jnp.sum(jnp.where(cul_mask, ccc, 0.0)) * (1.0 / DIM_CULTURE)

    # ---- restrained-uncertainty combine: pure scalar FMAs on the tail ----
    total = (unw_ref[0] * ce
             + unw_ref[1] * loss_low
             + unw_ref[2] * loss_high
             + unw_ref[3] * loss_cul
             + rc_ref[0])

    out_ref[0] = total
    out_ref[1] = ce
    out_ref[2] = loss_low
    out_ref[3] = loss_high
    out_ref[4] = loss_cul


# ------------------------------ Forward glue ------------------------------- #

@jax.jit
def uncertainty_criterion(preds, targets, log_vars):
    """Mirrors UncertaintyCriterion.forward(preds, targets, return_all=True)."""
    n, c = preds['voc_type'].shape
    labels = targets['voc_type'].astype(jnp.int32).reshape(n, 1)

    # Two concatenated regression slabs instead of six small operands.
    p_reg = jnp.concatenate(
        [preds['low'], preds['high'], preds['culture_emotion']],
        axis=-1).astype(jnp.float32)                               # (N, 24)
    t_reg = jnp.concatenate(
        [targets['low'], targets['high'], targets['culture_emotion']],
        axis=-1).astype(jnp.float32)                               # (N, 24)

    # Log-var-only terms: tiny (4,)-parameter math, precomputed once here so
    # the in-kernel epilogue is just scalar multiply-adds.
    lv = log_vars.astype(jnp.float32).reshape(NUM_TASKS)
    lv2 = lv * lv
    unw = (1.0 / (NUM_TASKS * lv2 + EPS)).astype(jnp.float32)      # (4,)
    reg_const = (jnp.sum(jnp.log1p(lv2))
                 + jnp.abs(PHI - jnp.sum(jnp.abs(lv)))).reshape(1).astype(jnp.float32)

    vmem = pl.BlockSpec(memory_space=pltpu.MemorySpace.VMEM)
    smem = pl.BlockSpec(memory_space=pltpu.MemorySpace.SMEM)

    cost = pl.CostEstimate(
        flops=int(n * c * 6 + n * D_TOTAL * 10 + 16 * D_TOTAL + 32),
        transcendentals=int(n * c + n),
        bytes_accessed=int(4 * (n + n * c + 2 * n * D_TOTAL
                                + NUM_TASKS + 1 + NUM_TASKS + 1)),
    )

    out = pl.pallas_call(
        _fused_kernel,
        out_shape=jax.ShapeDtypeStruct((NUM_TASKS + 1,), jnp.float32),
        in_specs=[vmem, vmem, vmem, vmem, smem, smem],
        out_specs=smem,
        cost_estimate=cost,
    )(labels,
      preds['voc_type'].astype(jnp.float32),
      p_reg, t_reg,
      unw, reg_const)

    per_task = {'voc_type': out[1], 'low': out[2],
                'high': out[3], 'culture_emotion': out[4]}
    return out[0], per_task


# ------------------------- Pure-JAX reference check ------------------------ #

def _reference(preds, targets, log_vars):
    logits = preds['voc_type'].astype(jnp.float32)
    labels = targets['voc_type']
    logp = jax.nn.log_softmax(logits, axis=-1)
    ce = -jnp.mean(jnp.take_along_axis(logp, labels[:, None], axis=-1))

    def ccc_loss(p, t):
        p = p.astype(jnp.float32); t = t.astype(jnp.float32)
        mp = jnp.mean(p, axis=0); mt = jnp.mean(t, axis=0)
        vp = jnp.mean((p - mp) ** 2, axis=0)
        vt = jnp.mean((t - mt) ** 2, axis=0)
        cov = jnp.mean((p - mp) * (t - mt), axis=0)
        ccc = 2.0 * cov / (vp + vt + (mp - mt) ** 2 + EPS)
        return jnp.mean(1.0 - ccc)

    losses = jnp.stack([ce,
                        ccc_loss(preds['low'], targets['low']),
                        ccc_loss(preds['high'], targets['high']),
                        ccc_loss(preds['culture_emotion'], targets['culture_emotion'])])
    lv = log_vars.astype(jnp.float32)
    lv2 = lv * lv
    total = (jnp.sum(losses / (NUM_TASKS * lv2 + EPS))
             + jnp.sum(jnp.log(1.0 + lv2))
             + jnp.abs(PHI - jnp.sum(jnp.abs(lv))))
    return total, losses


if __name__ == "__main__":
    key = jax.random.PRNGKey(0)
    N = 16
    ks = jax.random.split(key, 8)
    preds = {
        'voc_type':        jax.random.normal(ks[0], (N, NUM_CLASSES), jnp.float32),
        'low':             jax.random.normal(ks[1], (N, DIM_LOW), jnp.float32),
        'high':            jax.random.normal(ks[2], (N, DIM_HIGH), jnp.float32),
        'culture_emotion': jax.random.normal(ks[3], (N, DIM_CULTURE), jnp.float32),
    }
    targets = {
        'voc_type':        jax.random.randint(ks[4], (N,), 0, NUM_CLASSES),
        'low':             jax.random.normal(ks[5], (N, DIM_LOW), jnp.float32),
        'high':            jax.random.normal(ks[6], (N, DIM_HIGH), jnp.float32),
        'culture_emotion': jax.random.normal(ks[7], (N, DIM_CULTURE), jnp.float32),
    }
    # nn.Parameter init from the module: log_vars = [1/num_tasks] * num_tasks
    log_vars = jnp.full((NUM_TASKS,), 1.0 / NUM_TASKS, dtype=jnp.float32)

    total, per_task = uncertainty_criterion(preds, targets, log_vars)
    total = jax.block_until_ready(total)

    ref_total, ref_losses = _reference(preds, targets, log_vars)
    assert jnp.allclose(total, ref_total, rtol=1e-3, atol=1e-3), (total, ref_total)
    kernel_losses = jnp.stack([per_task['voc_type'], per_task['low'],
                               per_task['high'], per_task['culture_emotion']])
    assert jnp.allclose(kernel_losses, ref_losses, rtol=1e-3, atol=1e-3), (
        kernel_losses, ref_losses)

    print("KERNEL_OK")
</pallas_src>

<mosaic_0001>
module attributes {stable_mosaic.version = 11 : i64} {
  func.func @_fused_kernel(%arg0: memref<16x1xi32, #tpu.memory_space<vmem>>, %arg1: memref<16x8xf32, #tpu.memory_space<vmem>>, %arg2: memref<16x24xf32, #tpu.memory_space<vmem>>, %arg3: memref<16x24xf32, #tpu.memory_space<vmem>>, %arg4: memref<4xf32, #tpu.memory_space<smem>>, %arg5: memref<1xf32, #tpu.memory_space<smem>>, %arg6: memref<5xf32, #tpu.memory_space<smem>>) attributes {dimension_semantics = [], scalar_prefetch = 0 : i64, scratch_operands = 0 : i64, tpu.core_type = #tpu.core_type<tc>} {
    %c0 = arith.constant 0 : index
    %c0_0 = arith.constant 0 : index
    %0 = vector.load %arg1[%c0, %c0_0] : memref<16x8xf32, #tpu.memory_space<vmem>>, vector<16x8xf32>
    %cst = arith.constant dense<0xFF800000> : vector<16xf32>
    %1 = vector.multi_reduction <maximumf>, %0, %cst [1] : vector<16x8xf32> to vector<16xf32>
    %2 = vector.shape_cast %1 : vector<16xf32> to vector<16x1xf32>
    %3 = vector.broadcast %2 : vector<16x1xf32> to vector<16x8xf32>
    %4 = arith.subf %0, %3 : vector<16x8xf32>
    %5 = math.exp %4 : vector<16x8xf32>
    %cst_1 = arith.constant dense<0.000000e+00> : vector<16xf32>
    %6 = vector.multi_reduction <add>, %5, %cst_1 [1] : vector<16x8xf32> to vector<16xf32>
    %7 = vector.shape_cast %6 : vector<16xf32> to vector<16x1xf32>
    %8 = math.log %7 : vector<16x1xf32>
    %9 = arith.addf %2, %8 : vector<16x1xf32>
    %10 = tpu.iota {dimensions = array<i32: 1>} : vector<16x8xi32>
    %c0_2 = arith.constant 0 : index
    %c0_3 = arith.constant 0 : index
    %11 = vector.load %arg0[%c0_2, %c0_3] : memref<16x1xi32, #tpu.memory_space<vmem>>, vector<16x1xi32>
    %12 = vector.broadcast %11 : vector<16x1xi32> to vector<16x8xi32>
    %13 = arith.cmpi eq, %10, %12 : vector<16x8xi32>
    %cst_4 = arith.constant 0.000000e+00 : f32
    %14 = vector.broadcast %cst_4 : f32 to vector<16x8xf32>
    %15 = arith.select %13, %0, %14 : vector<16x8xi1>, vector<16x8xf32>
    %cst_5 = arith.constant dense<0.000000e+00> : vector<16xf32>
    %16 = vector.multi_reduction <add>, %15, %cst_5 [1] : vector<16x8xf32> to vector<16xf32>
    %17 = vector.shape_cast %16 : vector<16xf32> to vector<16x1xf32>
    %18 = arith.subf %9, %17 : vector<16x1xf32>
    %19 = vector.shape_cast %18 : vector<16x1xf32> to vector<1x16x1xf32>
    %cst_6 = arith.constant dense<0.000000e+00> : vector<1xf32>
    %20 = vector.multi_reduction <add>, %19, %cst_6 [1, 2] : vector<1x16x1xf32> to vector<1xf32>
    %21 = vector.shape_cast %20 : vector<1xf32> to vector<1x1x1xf32>
    %22 = vector.extract %21[0, 0, 0] : f32 from vector<1x1x1xf32>
    %cst_7 = arith.constant 6.250000e-02 : f32
    %23 = arith.mulf %22, %cst_7 : f32
    %c0_8 = arith.constant 0 : index
    %c0_9 = arith.constant 0 : index
    %24 = vector.load %arg2[%c0_8, %c0_9] : memref<16x24xf32, #tpu.memory_space<vmem>>, vector<16x24xf32>
    %c0_10 = arith.constant 0 : index
    %c0_11 = arith.constant 0 : index
    %25 = vector.load %arg3[%c0_10, %c0_11] : memref<16x24xf32, #tpu.memory_space<vmem>>, vector<16x24xf32>
    %cst_12 = arith.constant dense<0.000000e+00> : vector<24xf32>
    %26 = vector.multi_reduction <add>, %24, %cst_12 [0] : vector<16x24xf32> to vector<24xf32>
    %27 = vector.shape_cast %26 : vector<24xf32> to vector<1x24xf32>
    %cst_13 = arith.constant 1.600000e+01 : f32
    %28 = vector.broadcast %cst_13 : f32 to vector<1x24xf32>
    %29 = arith.divf %27, %28 : vector<1x24xf32>
    %cst_14 = arith.constant dense<0.000000e+00> : vector<24xf32>
    %30 = vector.multi_reduction <add>, %25, %cst_14 [0] : vector<16x24xf32> to vector<24xf32>
    %31 = vector.shape_cast %30 : vector<24xf32> to vector<1x24xf32>
    %cst_15 = arith.constant 1.600000e+01 : f32
    %32 = vector.broadcast %cst_15 : f32 to vector<1x24xf32>
    %33 = arith.divf %31, %32 : vector<1x24xf32>
    %34 = vector.broadcast %29 : vector<1x24xf32> to vector<16x24xf32>
    %35 = arith.subf %24, %34 : vector<16x24xf32>
    %36 = vector.broadcast %33 : vector<1x24xf32> to vector<16x24xf32>
    %37 = arith.subf %25, %36 : vector<16x24xf32>
    %38 = arith.mulf %35, %35 : vector<16x24xf32>
    %cst_16 = arith.constant dense<0.000000e+00> : vector<24xf32>
    %39 = vector.multi_reduction <add>, %38, %cst_16 [0] : vector<16x24xf32> to vector<24xf32>
    %40 = vector.shape_cast %39 : vector<24xf32> to vector<1x24xf32>
    %cst_17 = arith.constant 1.600000e+01 : f32
    %41 = vector.broadcast %cst_17 : f32 to vector<1x24xf32>
    %42 = arith.divf %40, %41 : vector<1x24xf32>
    %43 = arith.mulf %37, %37 : vector<16x24xf32>
    %cst_18 = arith.constant dense<0.000000e+00> : vector<24xf32>
    %44 = vector.multi_reduction <add>, %43, %cst_18 [0] : vector<16x24xf32> to vector<24xf32>
    %45 = vector.shape_cast %44 : vector<24xf32> to vector<1x24xf32>
    %cst_19 = arith.constant 1.600000e+01 : f32
    %46 = vector.broadcast %cst_19 : f32 to vector<1x24xf32>
    %47 = arith.divf %45, %46 : vector<1x24xf32>
    %48 = arith.mulf %35, %37 : vector<16x24xf32>
    %cst_20 = arith.constant dense<0.000000e+00> : vector<24xf32>
    %49 = vector.multi_reduction <add>, %48, %cst_20 [0] : vector<16x24xf32> to vector<24xf32>
    %50 = vector.shape_cast %49 : vector<24xf32> to vector<1x24xf32>
    %cst_21 = arith.constant 1.600000e+01 : f32
    %51 = vector.broadcast %cst_21 : f32 to vector<1x24xf32>
    %52 = arith.divf %50, %51 : vector<1x24xf32>
    %cst_22 = arith.constant 2.000000e+00 : f32
    %53 = vector.broadcast %cst_22 : f32 to vector<1x24xf32>
    %54 = arith.mulf %53, %52 : vector<1x24xf32>
    %55 = arith.addf %42, %47 : vector<1x24xf32>
    %56 = arith.subf %29, %33 : vector<1x24xf32>
    %57 = arith.mulf %56, %56 : vector<1x24xf32>
    %58 = arith.addf %55, %57 : vector<1x24xf32>
    %cst_23 = arith.constant 9.99999993E-9 : f32
    %59 = vector.broadcast %cst_23 : f32 to vector<1x24xf32>
    %60 = arith.addf %58, %59 : vector<1x24xf32>
    %61 = arith.divf %54, %60 : vector<1x24xf32>
    %62 = tpu.iota {dimensions = array<i32: 1>} : vector<1x24xi32>
    %c2_i32 = arith.constant 2 : i32
    %63 = vector.broadcast %c2_i32 : i32 to vector<1x24xi32>
    %64 = arith.cmpi slt, %62, %63 : vector<1x24xi32>
    %c2_i32_24 = arith.constant 2 : i32
    %65 = vector.broadcast %c2_i32_24 : i32 to vector<1x24xi32>
    %66 = arith.cmpi sge, %62, %65 : vector<1x24xi32>
    %c12_i32 = arith.constant 12 : i32
    %67 = vector.broadcast %c12_i32 : i32 to vector<1x24xi32>
    %68 = arith.cmpi slt, %62, %67 : vector<1x24xi32>
    %69 = arith.andi %66, %68 : vector<1x24xi1>
    %c12_i32_25 = arith.constant 12 : i32
    %70 = vector.broadcast %c12_i32_25 : i32 to vector<1x24xi32>
    %71 = arith.cmpi sge, %62, %70 : vector<1x24xi32>
    %cst_26 = arith.constant 0.000000e+00 : f32
    %72 = vector.broadcast %cst_26 : f32 to vector<1x24xf32>
    %73 = arith.select %64, %61, %72 : vector<1x24xi1>, vector<1x24xf32>
    %74 = vector.shape_cast %73 : vector<1x24xf32> to vector<1x1x24xf32>
    %cst_27 = arith.constant dense<0.000000e+00> : vector<1xf32>
    %75 = vector.multi_reduction <add>, %74, %cst_27 [1, 2] : vector<1x1x24xf32> to vector<1xf32>
    %76 = vector.shape_cast %75 : vector<1xf32> to vector<1x1x1xf32>
    %77 = vector.extract %76[0, 0, 0] : f32 from vector<1x1x1xf32>
    %cst_28 = arith.constant 5.000000e-01 : f32
    %78 = arith.mulf %77, %cst_28 : f32
    %cst_29 = arith.constant 1.000000e+00 : f32
    %79 = arith.subf %cst_29, %78 : f32
    %cst_30 = arith.constant 0.000000e+00 : f32
    %80 = vector.broadcast %cst_30 : f32 to vector<1x24xf32>
    %81 = arith.select %69, %61, %80 : vector<1x24xi1>, vector<1x24xf32>
    %82 = vector.shape_cast %81 : vector<1x24xf32> to vector<1x1x24xf32>
    %cst_31 = arith.constant dense<0.000000e+00> : vector<1xf32>
    %83 = vector.multi_reduction <add>, %82, %cst_31 [1, 2] : vector<1x1x24xf32> to vector<1xf32>
    %84 = vector.shape_cast %83 : vector<1xf32> to vector<1x1x1xf32>
    %85 = vector.extract %84[0, 0, 0] : f32 from vector<1x1x1xf32>
    %cst_32 = arith.constant 1.000000e-01 : f32
    %86 = arith.mulf %85, %cst_32 : f32
    %cst_33 = arith.constant 1.000000e+00 : f32
    %87 = arith.subf %cst_33, %86 : f32
    %cst_34 = arith.constant 0.000000e+00 : f32
    %88 = vector.broadcast %cst_34 : f32 to vector<1x24xf32>
    %89 = arith.select %71, %61, %88 : vector<1x24xi1>, vector<1x24xf32>
    %90 = vector.shape_cast %89 : vector<1x24xf32> to vector<1x1x24xf32>
    %cst_35 = arith.constant dense<0.000000e+00> : vector<1xf32>
    %91 = vector.multi_reduction <add>, %90, %cst_35 [1, 2] : vector<1x1x24xf32> to vector<1xf32>
    %92 = vector.shape_cast %91 : vector<1xf32> to vector<1x1x1xf32>
    %93 = vector.extract %92[0, 0, 0] : f32 from vector<1x1x1xf32>
    %cst_36 = arith.constant 0.0833333358 : f32
    %94 = arith.mulf %93, %cst_36 : f32
    %cst_37 = arith.constant 1.000000e+00 : f32
    %95 = arith.subf %cst_37, %94 : f32
    %c0_38 = arith.constant 0 : index
    %96 = memref.load %arg4[%c0_38] : memref<4xf32, #tpu.memory_space<smem>>
    %97 = arith.mulf %96, %23 : f32
    %c1 = arith.constant 1 : index
    %98 = memref.load %arg4[%c1] : memref<4xf32, #tpu.memory_space<smem>>
    %99 = arith.mulf %98, %79 : f32
    %100 = arith.addf %97, %99 : f32
    %c2 = arith.constant 2 : index
    %101 = memref.load %arg4[%c2] : memref<4xf32, #tpu.memory_space<smem>>
    %102 = arith.mulf %101, %87 : f32
    %103 = arith.addf %100, %102 : f32
    %c3 = arith.constant 3 : index
    %104 = memref.load %arg4[%c3] : memref<4xf32, #tpu.memory_space<smem>>
    %105 = arith.mulf %104, %95 : f32
    %106 = arith.addf %103, %105 : f32
    %c0_39 = arith.constant 0 : index
    %107 = memref.load %arg5[%c0_39] : memref<1xf32, #tpu.memory_space<smem>>
    %108 = arith.addf %106, %107 : f32
    %c0_40 = arith.constant 0 : index
    %109 = memref.load %arg6[%c0_40] : memref<5xf32, #tpu.memory_space<smem>>
    memref.store %108, %arg6[%c0_40] : memref<5xf32, #tpu.memory_space<smem>>
    %c1_41 = arith.constant 1 : index
    %110 = memref.load %arg6[%c1_41] : memref<5xf32, #tpu.memory_space<smem>>
    memref.store %23, %arg6[%c1_41] : memref<5xf32, #tpu.memory_space<smem>>
    %c2_42 = arith.constant 2 : index
    %111 = memref.load %arg6[%c2_42] : memref<5xf32, #tpu.memory_space<smem>>
    memref.store %79, %arg6[%c2_42] : memref<5xf32, #tpu.memory_space<smem>>
    %c3_43 = arith.constant 3 : index
    %112 = memref.load %arg6[%c3_43] : memref<5xf32, #tpu.memory_space<smem>>
    memref.store %87, %arg6[%c3_43] : memref<5xf32, #tpu.memory_space<smem>>
    %c4 = arith.constant 4 : index
    %113 = memref.load %arg6[%c4] : memref<5xf32, #tpu.memory_space<smem>>
    memref.store %95, %arg6[%c4] : memref<5xf32, #tpu.memory_space<smem>>
    return
  }
}

</mosaic_0001>

<llo_original>
// kernel: uncertainty_criterion.1
$region0: #{uncertainty_criterion.1}
  #allocation0 [shape = 'u32[]', space=smem, size = 0x4, offset = 0x4, fixed_abs, tag = 'smem constant byte address 0x4 - core index']
  #allocation1 [shape = 'u32[144,128]{1,0:T(1,128)}', space=vmem, size = 0x12000, scoped, tag = 'internal scratch']
  #allocation2 [shape = 'f32[1]{0:T(128)S(6)}', space=smem, size = 0x200, scoped, tag = 'scoped memory for uncertainty_criterion.1']
  %s0 = inlined_call_operand.vmem [shape: s32[16,1], index: 0, kind: input, shape index: {}]
  %s1 = inlined_call_operand.vmem [shape: f32[16,8], index: 1, kind: input, shape index: {}]
  %s2 = inlined_call_operand.vmem [shape: f32[16,24], index: 2, kind: input, shape index: {}]
  %s3 = inlined_call_operand.vmem [shape: f32[16,24], index: 3, kind: input, shape index: {}]
  %s4 = inlined_call_operand.vmem [shape: f32[4], index: 4, kind: input, shape index: {}]
  %s5 = inlined_call_operand.<no memory space> [shape: f32[1], index: 5, kind: input, shape index: {}]
  %s6 = inlined_call_operand.vmem [shape: f32[5], index: 6, kind: output, shape index: {}]
  %s7 = sld [smem:[#allocation0]]
  $region38: #{uncertainty_criterion.1} parent=0
    _
  %s9 = ssub.s32 1, %s7
  %s10 = scalar_select 0, %s9, %s7
  %11 = sst [smem:[#allocation2]] %s5
  $region1: #{uncertainty_criterion.1} parent=0
    #allocation3 [shape = 'u8[512]{0}', space=smem, size = 0x200, scoped, tag = 'input window, operand 4, single buffered']
    #allocation4 [shape = 's32[1]{0}', space=sflag, size = 0x4, scoped, tag = 'scoped memory for uncertainty_criterion.1']
    #allocation5 [shape = 's32[1]{0}', space=sflag, size = 0x4, scoped, tag = 'scoped memory for uncertainty_criterion.1']
    #allocation6 [shape = 'u8[512]{0}', space=smem, size = 0x200, scoped, tag = 'output window, operand 0, single buffered']
    %12 = vsyncpa [#allocation4], 0
    %13 = vsyncpa [#allocation5], 0
    // Predicated region
    $region2: #{uncertainty_criterion.1} parent=1 // pred_check
      _
    $region3: #{uncertainty_criterion.1} parent=1 // pred_check_branch
      %15 = sbr.rel (0) target = $region5
    $region4: #{uncertainty_criterion.1} parent=1 // pred_region
      _
    $region5: #{uncertainty_criterion.1} parent=1 // pred_fallthru
      _
    // Predicated region
    $region6: #{uncertainty_criterion.1} parent=1 // pred_check
      _
    $region7: #{uncertainty_criterion.1} parent=1 // pred_check_branch
      %17 = sbr.rel (0) target = $region9
    $region8: #{uncertainty_criterion.1} parent=1 // pred_region
      _
    $region9: #{uncertainty_criterion.1} parent=1 // pred_fallthru
      _
    // Predicated region
    $region10: #{uncertainty_criterion.1} parent=1 // pred_check
      _
    $region11: #{uncertainty_criterion.1} parent=1 // pred_check_branch
      %19 = sbr.rel (0) target = $region13
    $region12: #{uncertainty_criterion.1} parent=1 // pred_region
      _
    $region13: #{uncertainty_criterion.1} parent=1 // pred_fallthru
      _
    // Predicated region
    $region14: #{uncertainty_criterion.1} parent=1 // pred_check
      _
    $region15: #{uncertainty_criterion.1} parent=1 // pred_check_branch
      %21 = sbr.rel (0) target = $region17
    $region16: #{uncertainty_criterion.1} parent=1 // pred_region
      _
    $region17: #{uncertainty_criterion.1} parent=1 // pred_fallthru
      _
    // Predicated region
    $region18: #{uncertainty_criterion.1} parent=1 // pred_check
      _
    $region19: #{uncertainty_criterion.1} parent=1 // pred_check_branch
      %23 = sbr.rel (0) target = $region21
    $region20: #{uncertainty_criterion.1} parent=1 // pred_region
      %s25 = ssub.s32 16, 16
      %26 = vsyncadd [#allocation4], %s25
      %s28 = sshll.u32 %s4, 4
      %s29 = int_to_ptr.vmem [resolvable:$true] %s28
      %31 = dma.vmem_to_smem %s29, 16, [#allocation3], [#allocation4]
    $region21: #{uncertainty_criterion.1} parent=1 // pred_fallthru
      _
    // Predicated region
    $region22: #{uncertainty_criterion.1} parent=1 // pred_check
      _
    $region23: #{uncertainty_criterion.1} parent=1 // pred_check_branch
      %33 = sbr.rel (0) target = $region25
    $region24: #{uncertainty_criterion.1} parent=1 // pred_region
      _
    $region25: #{uncertainty_criterion.1} parent=1 // pred_fallthru
      _
    // Predicated region
    $region26: #{uncertainty_criterion.1} parent=1 // pred_check
      _
    $region27: #{uncertainty_criterion.1} parent=1 // pred_check_branch
      %35 = sbr.rel (0) target = $region29
    $region28: #{uncertainty_criterion.1} parent=1 // pred_region
      %36 = dma.done [#allocation4], 16
    $region29: #{uncertainty_criterion.1} parent=1 // pred_fallthru
      _
    %37 = sfence
    %v38 = vld [vmem:[%s1] sm:$0xff]
    %v39 = vld [vmem:[%s1 + $0x8] sm:$0xff]
    %vm40 = vcmask 64512
    %v41 = vsel %vm40, %v38, -inf
    %42 = vmax.xlane.f32.xlu0 %v41
    %v43 = vpop.xlane.xlu0 %42
    %v44 = vsel %vm40, %v39, -inf
    %45 = vmax.xlane.f32.xlu0 %v44
    %v46 = vpop.xlane.xlu0 %45
    %v47 = vsub.f32 %v38, %v43
    %v48 = vsub.f32 %v39, %v46
    %v49 = vmul.f32 %v47, 1.442695
    %v50 = vpow.pop %v49
    %v51 = vmul.f32 %v48, 1.442695
    %v52 = vpow.pop %v51
    %v53 = vsel %vm40, %v50, 0.0
    %54 = vadd.xlane.f32.xlu0 %v53
    %v55 = vpop.xlane.xlu0 %54
    %v56 = vsel %vm40, %v52, 0.0
    %57 = vadd.xlane.f32.xlu0 %v56
    %v58 = vpop.xlane.xlu0 %57
    %v59 = vlog2.pop %v55
    %v60 = vmul.f32 %v59, 0.6931472
    %v61 = vlog2.pop %v58
    %v62 = vmul.f32 %v61, 0.6931472
    %v63 = vadd.f32 %v43, %v60
    %v64 = vadd.f32 %v46, %v62
    %v65 = vlaneseq
    %v66 = vand.u32 %v65, 127
    %v67 = vld [vmem:[%s0] sm:$0xff]
    %v68 = vld [vmem:[%s0 + $0x8] sm:$0xff]
    %69 = vset.pattern.permute.xlu0 0
    %70 = vperm.xlu0 %69, %v67
    %v71 = vpop.permute.xlu0 %70
    %72 = vset.pattern.permute.xlu0 0
    %73 = vperm.xlu0 %72, %v68
    %v74 = vpop.permute.xlu0 %73
    %vm75 = vcmp.eq.s32.totalorder %v66, %v71
    %vm76 = vcmp.eq.s32.totalorder %v66, %v74
    %v77 = vsel %vm75, %v38, 0.0
    %v78 = vsel %vm76, %v39, 0.0
    %v79 = vsel %vm40, %v77, 0.0
    %80 = vadd.xlane.f32.xlu0 %v79
    %v81 = vpop.xlane.xlu0 %80
    %v82 = vsel %vm40, %v78, 0.0
    %83 = vadd.xlane.f32.xlu0 %v82
    %v84 = vpop.xlane.xlu0 %83
    %v85 = vsub.f32 %v63, %v81
    %v86 = vsub.f32 %v64, %v84
    %vm87 = vcmask 7168
    %v88 = vsel %vm87, %v85, 0.0
    %v89 = vsel %vm87, %v86, 0.0
    %v90 = vadd.f32 %v88, %v89
    %91 = vadd.xlane.f32.xlu0 %v90
    %v92 = vpop.xlane.xlu0 %91
    %v93 = vrot.slane %v92, 4
    %v94 = vadd.f32 %v92, %v93
    %v95 = vrot.slane %v94, 2
    %v96 = vadd.f32 %v94, %v95
    %v97 = vrot.slane %v96, 1
    %v98 = vadd.f32 %v96, %v97
    %s99 = vtos %v98
    %s100 = smul.f32 %s99, 0.0625
    %v101 = vld [vmem:[%s2] sm:$0xff]
    %v102 = vld [vmem:[%s2 + $0x8] sm:$0xff]
    %v103 = vld [vmem:[%s3] sm:$0xff]
    %v104 = vld [vmem:[%s3 + $0x8] sm:$0xff]
    %vm105 = vcmask 195584
    %v106 = vsel %vm105, %v101, 0.0
    %v107 = vsel %vm105, %v102, 0.0
    %v108 = vadd.f32 %v106, %v107
    %v109 = vrot.slane %v108, 4
    %v110 = vadd.f32 %v108, %v109
    %v111 = vrot.slane %v110, 2
    %v112 = vadd.f32 %v110, %v111
    %v113 = vrot.slane %v112, 1
    %v114 = vadd.f32 %v112, %v113
    %v115 = vrcp.pop 16.0
    %v116 = vmul.f32 %v114, %v115
    %v117 = vsel %vm105, %v103, 0.0
    %v118 = vsel %vm105, %v104, 0.0
    %v119 = vadd.f32 %v117, %v118
    %v120 = vrot.slane %v119, 4
    %v121 = vadd.f32 %v119, %v120
    %v122 = vrot.slane %v121, 2
    %v123 = vadd.f32 %v121, %v122
    %v124 = vrot.slane %v123, 1
    %v125 = vadd.f32 %v123, %v124
    %v126 = vmul.f32 %v125, %v115
    %v127 = vsub.f32 %v101, %v116
    %v128 = vsub.f32 %v102, %v116
    %v129 = vsub.f32 %v103, %v126
    %v130 = vsub.f32 %v104, %v126
    %v131 = vmul.f32 %v127, %v127
    %v132 = vmul.f32 %v128, %v128
    %v133 = vsel %vm105, %v131, 0.0
    %v134 = vsel %vm105, %v132, 0.0
    %v135 = vadd.f32 %v133, %v134
    %v136 = vrot.slane %v135, 4
    %v137 = vadd.f32 %v135, %v136
    %v138 = vrot.slane %v137, 2
    %v139 = vadd.f32 %v137, %v138
    %v140 = vrot.slane %v139, 1
    %v141 = vadd.f32 %v139, %v140
    %v142 = vmul.f32 %v141, %v115
    %v143 = vmul.f32 %v129, %v129
    %v144 = vmul.f32 %v130, %v130
    %v145 = vsel %vm105, %v143, 0.0
    %v146 = vsel %vm105, %v144, 0.0
    %v147 = vadd.f32 %v145, %v146
    %v148 = vrot.slane %v147, 4
    %v149 = vadd.f32 %v147, %v148
    %v150 = vrot.slane %v149, 2
    %v151 = vadd.f32 %v149, %v150
    %v152 = vrot.slane %v151, 1
    %v153 = vadd.f32 %v151, %v152
    %v154 = vmul.f32 %v153, %v115
    %v155 = vmul.f32 %v127, %v129
    %v156 = vmul.f32 %v128, %v130
    %v157 = vsel %vm105, %v155, 0.0
    %v158 = vsel %vm105, %v156, 0.0
    %v159 = vadd.f32 %v157, %v158
    %v160 = vrot.slane %v159, 4
    %v161 = vadd.f32 %v159, %v160
    %v162 = vrot.slane %v161, 2
    %v163 = vadd.f32 %v161, %v162
    %v164 = vrot.slane %v163, 1
    %v165 = vadd.f32 %v163, %v164
    %v166 = vmul.f32 %v165, %v115
    %v167 = vmul.f32 %v166, 2.0
    %v168 = vadd.f32 %v142, %v154
    %v169 = vsub.f32 %v116, %v126
    %v170 = vmul.f32 %v169, %v169
    %v171 = vadd.f32 %v168, %v170
    %v172 = vadd.f32 %v171, 1e-08
    %v173 = vrcp.pop %v172
    %v174 = vmul.f32 %v167, %v173
    %vm175 = vcmp.lt.s32.totalorder %v66, 2
    %vm176 = vcmp.ge.s32.totalorder %v66, 2
    %vm177 = vcmp.lt.s32.totalorder %v66, 12
    %vm178 = vmand %vm176, %vm177
    %vm179 = vcmp.ge.s32.totalorder %v66, 12
    %v180 = vsel %vm175, %v174, 0.0
    %vm181 = vcmask 188416
    %v182 = vsel %vm181, %v180, 0.0
    %183 = vadd.xlane.f32.xlu0 %v182
    %v184 = vpop.xlane.xlu0 %183
    %v185 = vrot.slane %v184, 4
    %v186 = vadd.f32 %v184, %v185
    %v187 = vrot.slane %v186, 2
    %v188 = vadd.f32 %v186, %v187
    %v189 = vrot.slane %v188, 1
    %v190 = vadd.f32 %v188, %v189
    %s191 = vtos %v190
    %s192 = smul.f32 %s191, 0.5
    %s193 = ssub.f32 1.0, %s192
    %v194 = vsel %vm178, %v174, 0.0
    %v195 = vsel %vm181, %v194, 0.0
    %196 = vadd.xlane.f32.xlu0 %v195
    %v197 = vpop.xlane.xlu0 %196
    %v198 = vrot.slane %v197, 4
    %v199 = vadd.f32 %v197, %v198
    %v200 = vrot.slane %v199, 2
    %v201 = vadd.f32 %v199, %v200
    %v202 = vrot.slane %v201, 1
    %v203 = vadd.f32 %v201, %v202
    %s204 = vtos %v203
    %s205 = smul.f32 %s204, 0.1
    %s206 = ssub.f32 1.0, %s205
    %v207 = vsel %vm179, %v174, 0.0
    %v208 = vsel %vm181, %v207, 0.0
    %209 = vadd.xlane.f32.xlu0 %v208
    %v210 = vpop.xlane.xlu0 %209
    %v211 = vrot.slane %v210, 4
    %v212 = vadd.f32 %v210, %v211
    %v213 = vrot.slane %v212, 2
    %v214 = vadd.f32 %v212, %v213
    %v215 = vrot.slane %v214, 1
    %v216 = vadd.f32 %v214, %v215
    %s217 = vtos %v216
    %s218 = smul.f32 %s217, 0.083333336
    %s219 = ssub.f32 1.0, %s218
    %s220 = sld [smem:[#allocation3]]
    %s221 = smul.f32 %s220, %s100
    %s222 = sld [smem:[#allocation3 + $0x1]]
    %s223 = smul.f32 %s222, %s193
    %s224 = sadd.f32 %s221, %s223
    %s225 = sld [smem:[#allocation3 + $0x2]]
    %s226 = smul.f32 %s225, %s206
    %s227 = sadd.f32 %s224, %s226
    %s228 = sld [smem:[#allocation3 + $0x3]]
    %s229 = smul.f32 %s228, %s219
    %s230 = sadd.f32 %s227, %s229
    %s231 = sld [smem:[#allocation2]]
    %s232 = sadd.f32 %s230, %s231
    %s233 = scalar_lea.smem [#allocation6], 0
    %234 = sst [smem:[%s233]] %s232
    %s235 = scalar_lea.smem [#allocation6], 1
    %236 = sst [smem:[%s235]] %s100
    %s237 = scalar_lea.smem [#allocation6], 2
    %238 = sst [smem:[%s237]] %s193
    %s239 = scalar_lea.smem [#allocation6], 3
    %240 = sst [smem:[%s239]] %s206
    %s241 = scalar_lea.smem [#allocation6], 4
    %242 = sst [smem:[%s241]] %s219
    // Predicated region
    $region30: #{uncertainty_criterion.1} parent=1 // pred_check
      _
    $region31: #{uncertainty_criterion.1} parent=1 // pred_check_branch
      %244 = sbr.rel (0) target = $region33
    $region32: #{uncertainty_criterion.1} parent=1 // pred_region
      %s246 = ssub.s32 16, 16
      %247 = vsyncadd [#allocation5], %s246
      %s249 = sshll.u32 %s6, 4
      %s250 = int_to_ptr.vmem [resolvable:$true] %s249
      %252 = dma.smem_to_vmem [#allocation6], 16, %s250, [#allocation5]
    $region33: #{uncertainty_criterion.1} parent=1 // pred_fallthru
      _
    // Predicated region
    $region34: #{uncertainty_criterion.1} parent=1 // pred_check
      _
    $region35: #{uncertainty_criterion.1} parent=1 // pred_check_branch
      %254 = sbr.rel (0) target = $region37
    $region36: #{uncertainty_criterion.1} parent=1 // pred_region
      %255 = dma.done [#allocation5], 16
    $region37: #{uncertainty_criterion.1} parent=1 // pred_fallthru
      _
    %256 = sfence
    %257 = vsyncpa [#allocation4], 1
    %258 = vsyncpa [#allocation5], 1

</llo_original>
